<compile_context>
chip_gen: v7x
topology: tpu7x:2x2x1
jax: 0.10.0
libtpu: 0.0.40
codegen_flags: <defaults>
</compile_context>

<pallas_src>
import functools
import math

import jax
import jax.numpy as jnp
from jax import lax
from jax.experimental import pallas as pl
from jax.experimental.pallas import tpu as pltpu


def _round_up(n, k):
    return ((n + k - 1) // k) * k


def uce_kernel(xn_ref, wnt_ref, label_ref, pidx_ref, bias_ref, out_ref,
               acc_ref, *, s, m, l):
    """One (batch-tile, class-tile) step of the Unified Cross-Entropy loss.

    xn_ref:    (TB, D)  bf16  pre-normalized input rows (batch tile)
    wnt_ref:   (D, TP)  bf16  pre-normalized, pre-transposed class weights
    label_ref: (TB, 1)  i32   labels (padded rows = -1)
    pidx_ref:  (1, TP)  i32   partial class indices (padded cols = -2)
    bias_ref:  (1, 1)   f32   scalar bias (SMEM)
    out_ref:   (1, 1)   f32   per-batch-tile loss partial sum (SMEM)
    acc_ref:   (TB, 1)  f32   per-row loss accumulator across class tiles
    """
    j = pl.program_id(1)                      # class-tile (reduction) index

    @pl.when(j == 0)
    def _init():
        acc_ref[...] = jnp.zeros_like(acc_ref)

    # cos_theta tile = xn @ wn.T  -> straight (M,K)x(K,N) MXU feed, f32 acc.
    cos = lax.dot_general(xn_ref[...], wnt_ref[...], (((1,), (0,)), ((), ())),
                          preferred_element_type=jnp.float32)        # (TB, TP)

    bias = bias_ref[0, 0]
    label = label_ref[...]                                           # (TB, 1)
    pidx = pidx_ref[...]                                             # (1, TP)

    # Negative-class loss for every class of the tile. Padded classes get a
    # -2s shift folded into the argument so the clipped value is -s and
    # log1p(exp(-s)) == 0 in f32 (no separate mask multiply needed).
    pad_shift = jnp.where(pidx >= 0, 0.0, -2.0 * s)                  # (1, TP)
    n_loss = jnp.log(1.0 + jnp.exp(
        jnp.clip(s * cos - bias + pad_shift, -s, s))) * l            # (TB, TP)
    row_n = jnp.sum(n_loss, axis=1, keepdims=True)                   # (TB, 1)

    # Target-class correction: swap n_loss -> p_loss only on the target column
    # (at most one match per row per class tile; rows whose label is not in
    # this tile get has_tgt == 0 and fall through to pure n_loss).
    one_hot = (label == pidx).astype(jnp.float32)                    # (TB, TP)
    tgt_cos = jnp.sum(one_hot * cos, axis=1, keepdims=True)          # (TB, 1)
    has_tgt = jnp.sum(one_hot, axis=1, keepdims=True)                # 0. or 1.
    p_val = jnp.log(1.0 + jnp.exp(-jnp.clip(s * (tgt_cos - m) - bias, -s, s)))
    n_val = jnp.log(1.0 + jnp.exp(jnp.clip(s * tgt_cos - bias, -s, s))) * l
    corr = has_tgt * (p_val - n_val)                                 # (TB, 1)

    row_valid = (label >= 0).astype(jnp.float32)                     # (TB, 1)
    acc_ref[...] += (row_n + corr) * row_valid

    @pl.when(j == pl.num_programs(1) - 1)
    def _finalize():
        out_ref[0, 0] = jnp.sum(acc_ref[...])


def unified_cross_entropy_loss(x, label, partial_index, weight, bias, *,
                               m=0.4, s=64.0, l=1.0,
                               tb=256, tp=512, matmul_dtype=jnp.bfloat16):
    B, D = x.shape
    P = partial_index.shape[0]

    # ---- loop-invariant work, done ONCE in the wrapper ----------------------
    # F.normalize(x, eps=1e-5): x / max(||x||, eps) == x * rsqrt(max(||x||^2, eps^2))
    x32 = x.astype(jnp.float32)
    xn = x32 * lax.rsqrt(
        jnp.maximum(jnp.sum(x32 * x32, axis=1, keepdims=True), 1e-10))
    w_sel = jnp.take(weight, partial_index, axis=0).astype(jnp.float32)  # (P, D)
    wn = w_sel * lax.rsqrt(
        jnp.maximum(jnp.sum(w_sel * w_sel, axis=1, keepdims=True), 1e-10))

    # ---- pad batch to a multiple of the batch tile (>=8) and classes to a
    #      lane-dense multiple of 128; sentinels never match and are masked.
    tb_eff = min(tb, _round_up(B, 8))
    B_pad = _round_up(B, tb_eff)
    tp_eff = min(tp, _round_up(P, 128))
    P_pad = _round_up(P, tp_eff)

    xn_p = jnp.zeros((B_pad, D), matmul_dtype).at[:B].set(xn.astype(matmul_dtype))
    wnt_p = jnp.zeros((D, P_pad), matmul_dtype).at[:, :P].set(
        wn.T.astype(matmul_dtype))                                     # (D, P_pad)
    label_p = jnp.full((B_pad, 1), -1, jnp.int32).at[:B, 0].set(
        label.astype(jnp.int32))
    pidx_p = jnp.full((1, P_pad), -2, jnp.int32).at[0, :P].set(
        partial_index.astype(jnp.int32))
    bias2d = bias.reshape(1, 1).astype(jnp.float32)

    nb, nc = B_pad // tb_eff, P_pad // tp_eff

    kernel = functools.partial(uce_kernel, s=float(s), m=float(m), l=float(l))

    partials = pl.pallas_call(
        kernel,
        out_shape=jax.ShapeDtypeStruct((nb, 1), jnp.float32),
        grid=(nb, nc),
        in_specs=[
            pl.BlockSpec((tb_eff, D), lambda i, j: (i, 0)),           # xn tile
            pl.BlockSpec((D, tp_eff), lambda i, j: (0, j)),           # wn^T tile
            pl.BlockSpec((tb_eff, 1), lambda i, j: (i, 0)),           # labels
            pl.BlockSpec((1, tp_eff), lambda i, j: (0, j)),           # pidx tile
            pl.BlockSpec((1, 1), lambda i, j: (0, 0),
                         memory_space=pltpu.MemorySpace.SMEM),        # bias
        ],
        out_specs=pl.BlockSpec((1, 1), lambda i, j: (i, 0),
                               memory_space=pltpu.MemorySpace.SMEM),  # partials
        scratch_shapes=[pltpu.VMEM((tb_eff, 1), jnp.float32)],        # row acc
        compiler_params=pltpu.CompilerParams(
            dimension_semantics=("parallel", "arbitrary"),
            vmem_limit_bytes=48 * 1024 * 1024),
    )(xn_p, wnt_p, label_p, pidx_p, bias2d)

    # Final reduction + mean over the REAL batch, once in the wrapper.
    return jnp.sum(partials) / B


def reference_loss(x, label, partial_index, weight, bias, m=0.4, s=64.0, l=1.0,
                   matmul_dtype=jnp.float32):
    """Pure-JAX reference matching the PyTorch module (matmul dtype selectable)."""
    xn = x * lax.rsqrt(jnp.maximum(jnp.sum(x * x, axis=1, keepdims=True), 1e-10))
    w = weight[partial_index]
    wn = w * lax.rsqrt(jnp.maximum(jnp.sum(w * w, axis=1, keepdims=True), 1e-10))
    cos = jnp.dot(xn.astype(matmul_dtype), wn.astype(matmul_dtype).T,
                  preferred_element_type=jnp.float32)
    cmp_ = s * (cos - m) - bias[0]
    cmn = s * cos - bias[0]
    p_loss = jnp.log(1.0 + jnp.exp(-jnp.clip(cmp_, -s, s)))
    n_loss = jnp.log(1.0 + jnp.exp(jnp.clip(cmn, -s, s))) * l
    one_hot = label[:, None] == partial_index[None, :]
    loss = jnp.where(one_hot, p_loss, n_loss)
    return loss.sum(axis=1).mean()


if __name__ == "__main__":
    # Small deterministic configuration.
    in_features = 32
    out_features = 64
    r = 1.0
    B = 16          # batch
    P = 16          # number of partial classes
    m, s, l = 0.4, 64.0, 1.0

    key = jax.random.PRNGKey(0)
    kx, kw, kl, kp = jax.random.split(key, 4)

    # Parameters (deterministic, matching the module's __init__ shapes/inits).
    # kaiming_normal_(a=1, fan_in, leaky_relu) -> std = sqrt(2/(1+1))/sqrt(fan_in)
    w_std = 1.0 / math.sqrt(in_features)
    weight = jax.random.normal(kw, (out_features, in_features),
                               dtype=jnp.float32) * w_std
    bias = jnp.full((1,), math.log(out_features * r * 10), dtype=jnp.float32)

    # Inputs.
    x = jax.random.normal(kx, (B, in_features), dtype=jnp.float32)
    label = jax.random.randint(kl, (B,), 0, out_features, dtype=jnp.int32)
    partial_index = jax.random.permutation(kp, out_features)[:P].astype(jnp.int32)

    loss = unified_cross_entropy_loss(x, label, partial_index, weight, bias,
                                      m=m, s=s, l=l,
                                      matmul_dtype=jnp.bfloat16)
    loss = jax.block_until_ready(loss)

    # Compare against a pure-JAX reference using the same matmul operand dtype
    # (bf16 operands, f32 accumulation) so the check isolates the kernel logic.
    ref = reference_loss(x, label, partial_index, weight, bias, m=m, s=s, l=l,
                         matmul_dtype=jnp.bfloat16)
    assert jnp.allclose(loss, ref, rtol=5e-3, atol=5e-3), (float(loss), float(ref))

    print("KERNEL_OK")
</pallas_src>

<mosaic_0001>
module attributes {stable_mosaic.version = 11 : i64} {
  func.func @uce_kernel(%arg0: i32, %arg1: i32, %arg2: memref<16x32xbf16, #tpu.memory_space<vmem>>, %arg3: memref<32x128xbf16, #tpu.memory_space<vmem>>, %arg4: memref<16x1xi32, #tpu.memory_space<vmem>>, %arg5: memref<1x128xi32, #tpu.memory_space<vmem>>, %arg6: memref<1x1xf32, #tpu.memory_space<smem>>, %arg7: memref<1x1xf32, #tpu.memory_space<smem>>, %arg8: memref<16x1xf32, #tpu.memory_space<vmem>>) attributes {dimension_semantics = [#tpu.dimension_semantics<parallel>, #tpu.dimension_semantics<arbitrary>], iteration_bounds = array<i64: 1, 1>, scalar_prefetch = 0 : i64, scratch_operands = 1 : i64, tpu.core_type = #tpu.core_type<tc>, window_params = [{transform_indices = @transform_0, window_bounds = array<i64: 16, 32>}, {transform_indices = @transform_1, window_bounds = array<i64: 32, 128>}, {transform_indices = @transform_2, window_bounds = array<i64: 16, 1>}, {transform_indices = @transform_3, window_bounds = array<i64: 1, 128>}, {transform_indices = @transform_4, window_bounds = array<i64: 1, 1>}, {transform_indices = @transform_5, window_bounds = array<i64: 1, 1>}]} {
    %c0_i32 = arith.constant 0 : i32
    %0 = arith.cmpi eq, %arg1, %c0_i32 : i32
    %1 = arith.extui %0 : i1 to i32
    %c0_i32_0 = arith.constant 0 : i32
    %2 = arith.cmpi ne, %1, %c0_i32_0 : i32
    scf.if %2 {
      %cst_39 = arith.constant 0.000000e+00 : f32
      %86 = vector.broadcast %cst_39 : f32 to vector<16x1xf32>
      %c0_40 = arith.constant 0 : index
      %c0_41 = arith.constant 0 : index
      %87 = vector.load %arg8[%c0_40, %c0_41] : memref<16x1xf32, #tpu.memory_space<vmem>>, vector<16x1xf32>
      tpu.vector_store %arg8[%c0_40, %c0_41], %86 {strides = array<i32>} : memref<16x1xf32, #tpu.memory_space<vmem>>, vector<16x1xf32>,
    } else {
    }
    %c0 = arith.constant 0 : index
    %c0_1 = arith.constant 0 : index
    %3 = vector.load %arg2[%c0, %c0_1] : memref<16x32xbf16, #tpu.memory_space<vmem>>, vector<16x32xbf16>
    %c0_2 = arith.constant 0 : index
    %c0_3 = arith.constant 0 : index
    %4 = vector.load %arg3[%c0_2, %c0_3] : memref<32x128xbf16, #tpu.memory_space<vmem>>, vector<32x128xbf16>
    %cst = arith.constant dense<0.000000e+00> : vector<16x128xf32>
    %5 = tpu.matmul %3, %4, %cst {dimension_numbers = #tpu.dot_dimension_numbers<[1], [0], [0], [1], [0, 0, 1, 1], [], []>} : vector<16x32xbf16>, vector<32x128xbf16>, vector<16x128xf32> -> vector<16x128xf32>
    %c0_4 = arith.constant 0 : index
    %c0_5 = arith.constant 0 : index
    %6 = memref.load %arg6[%c0_4, %c0_5] : memref<1x1xf32, #tpu.memory_space<smem>>
    %c0_6 = arith.constant 0 : index
    %c0_7 = arith.constant 0 : index
    %7 = vector.load %arg4[%c0_6, %c0_7] : memref<16x1xi32, #tpu.memory_space<vmem>>, vector<16x1xi32>
    %c0_8 = arith.constant 0 : index
    %c0_9 = arith.constant 0 : index
    %8 = vector.load %arg5[%c0_8, %c0_9] : memref<1x128xi32, #tpu.memory_space<vmem>>, vector<1x128xi32>
    %c0_i32_10 = arith.constant 0 : i32
    %9 = vector.broadcast %c0_i32_10 : i32 to vector<1x128xi32>
    %10 = arith.cmpi sge, %8, %9 : vector<1x128xi32>
    %cst_11 = arith.constant 0.000000e+00 : f32
    %cst_12 = arith.constant -1.280000e+02 : f32
    %11 = vector.broadcast %cst_11 : f32 to vector<1x128xf32>
    %12 = vector.broadcast %cst_12 : f32 to vector<1x128xf32>
    %13 = arith.select %10, %11, %12 : vector<1x128xi1>, vector<1x128xf32>
    %cst_13 = arith.constant 6.400000e+01 : f32
    %14 = vector.broadcast %cst_13 : f32 to vector<16x128xf32>
    %15 = arith.mulf %14, %5 : vector<16x128xf32>
    %16 = vector.broadcast %6 : f32 to vector<16x128xf32>
    %17 = arith.subf %15, %16 : vector<16x128xf32>
    %18 = vector.broadcast %13 : vector<1x128xf32> to vector<16x128xf32>
    %19 = arith.addf %17, %18 : vector<16x128xf32>
    %cst_14 = arith.constant -6.400000e+01 : f32
    %cst_15 = arith.constant 6.400000e+01 : f32
    %20 = vector.broadcast %cst_14 : f32 to vector<16x128xf32>
    %21 = arith.maximumf %20, %19 : vector<16x128xf32>
    %22 = vector.broadcast %cst_15 : f32 to vector<16x128xf32>
    %23 = arith.minimumf %22, %21 : vector<16x128xf32>
    %24 = math.exp %23 : vector<16x128xf32>
    %cst_16 = arith.constant 1.000000e+00 : f32
    %25 = vector.broadcast %cst_16 : f32 to vector<16x128xf32>
    %26 = arith.addf %25, %24 : vector<16x128xf32>
    %27 = math.log %26 : vector<16x128xf32>
    %cst_17 = arith.constant 1.000000e+00 : f32
    %28 = vector.broadcast %cst_17 : f32 to vector<16x128xf32>
    %29 = arith.mulf %27, %28 : vector<16x128xf32>
    %cst_18 = arith.constant dense<0.000000e+00> : vector<16xf32>
    %30 = vector.multi_reduction <add>, %29, %cst_18 [1] : vector<16x128xf32> to vector<16xf32>
    %31 = vector.shape_cast %30 : vector<16xf32> to vector<16x1xf32>
    %32 = vector.broadcast %7 : vector<16x1xi32> to vector<16x128xi32>
    %33 = vector.broadcast %8 : vector<1x128xi32> to vector<16x128xi32>
    %34 = arith.cmpi eq, %32, %33 : vector<16x128xi32>
    %35 = arith.extui %34 : vector<16x128xi1> to vector<16x128xi32>
    %36 = arith.sitofp %35 : vector<16x128xi32> to vector<16x128xf32>
    %37 = arith.mulf %36, %5 : vector<16x128xf32>
    %cst_19 = arith.constant dense<0.000000e+00> : vector<16xf32>
    %38 = vector.multi_reduction <add>, %37, %cst_19 [1] : vector<16x128xf32> to vector<16xf32>
    %39 = vector.shape_cast %38 : vector<16xf32> to vector<16x1xf32>
    %cst_20 = arith.constant dense<0.000000e+00> : vector<16xf32>
    %40 = vector.multi_reduction <add>, %36, %cst_20 [1] : vector<16x128xf32> to vector<16xf32>
    %41 = vector.shape_cast %40 : vector<16xf32> to vector<16x1xf32>
    %cst_21 = arith.constant 4.000000e-01 : f32
    %42 = vector.broadcast %cst_21 : f32 to vector<16x1xf32>
    %43 = arith.subf %39, %42 : vector<16x1xf32>
    %cst_22 = arith.constant 6.400000e+01 : f32
    %44 = vector.broadcast %cst_22 : f32 to vector<16x1xf32>
    %45 = arith.mulf %44, %43 : vector<16x1xf32>
    %46 = vector.broadcast %6 : f32 to vector<16x1xf32>
    %47 = arith.subf %45, %46 : vector<16x1xf32>
    %cst_23 = arith.constant -6.400000e+01 : f32
    %cst_24 = arith.constant 6.400000e+01 : f32
    %48 = vector.broadcast %cst_23 : f32 to vector<16x1xf32>
    %49 = arith.maximumf %48, %47 : vector<16x1xf32>
    %50 = vector.broadcast %cst_24 : f32 to vector<16x1xf32>
    %51 = arith.minimumf %50, %49 : vector<16x1xf32>
    %cst_25 = arith.constant 0.000000e+00 : f32
    %52 = vector.broadcast %cst_25 : f32 to vector<16x1xf32>
    %53 = arith.subf %52, %51 : vector<16x1xf32>
    %54 = math.exp %53 : vector<16x1xf32>
    %cst_26 = arith.constant 1.000000e+00 : f32
    %55 = vector.broadcast %cst_26 : f32 to vector<16x1xf32>
    %56 = arith.addf %55, %54 : vector<16x1xf32>
    %57 = math.log %56 : vector<16x1xf32>
    %cst_27 = arith.constant 6.400000e+01 : f32
    %58 = vector.broadcast %cst_27 : f32 to vector<16x1xf32>
    %59 = arith.mulf %58, %39 : vector<16x1xf32>
    %60 = vector.broadcast %6 : f32 to vector<16x1xf32>
    %61 = arith.subf %59, %60 : vector<16x1xf32>
    %cst_28 = arith.constant -6.400000e+01 : f32
    %cst_29 = arith.constant 6.400000e+01 : f32
    %62 = vector.broadcast %cst_28 : f32 to vector<16x1xf32>
    %63 = arith.maximumf %62, %61 : vector<16x1xf32>
    %64 = vector.broadcast %cst_29 : f32 to vector<16x1xf32>
    %65 = arith.minimumf %64, %63 : vector<16x1xf32>
    %66 = math.exp %65 : vector<16x1xf32>
    %cst_30 = arith.constant 1.000000e+00 : f32
    %67 = vector.broadcast %cst_30 : f32 to vector<16x1xf32>
    %68 = arith.addf %67, %66 : vector<16x1xf32>
    %69 = math.log %68 : vector<16x1xf32>
    %cst_31 = arith.constant 1.000000e+00 : f32
    %70 = vector.broadcast %cst_31 : f32 to vector<16x1xf32>
    %71 = arith.mulf %69, %70 : vector<16x1xf32>
    %72 = arith.subf %57, %71 : vector<16x1xf32>
    %73 = arith.mulf %41, %72 : vector<16x1xf32>
    %c0_i32_32 = arith.constant 0 : i32
    %74 = vector.broadcast %c0_i32_32 : i32 to vector<16x1xi32>
    %75 = arith.cmpi sge, %7, %74 : vector<16x1xi32>
    %76 = arith.extui %75 : vector<16x1xi1> to vector<16x1xi32>
    %77 = arith.sitofp %76 : vector<16x1xi32> to vector<16x1xf32>
    %c0_33 = arith.constant 0 : index
    %c0_34 = arith.constant 0 : index
    %78 = vector.load %arg8[%c0_33, %c0_34] : memref<16x1xf32, #tpu.memory_space<vmem>>, vector<16x1xf32>
    %79 = arith.addf %31, %73 : vector<16x1xf32>
    %80 = arith.mulf %79, %77 : vector<16x1xf32>
    %81 = arith.addf %78, %80 : vector<16x1xf32>
    %c0_35 = arith.constant 0 : index
    %c0_36 = arith.constant 0 : index
    %82 = vector.load %arg8[%c0_35, %c0_36] : memref<16x1xf32, #tpu.memory_space<vmem>>, vector<16x1xf32>
    tpu.vector_store %arg8[%c0_35, %c0_36], %81 {strides = array<i32>} : memref<16x1xf32, #tpu.memory_space<vmem>>, vector<16x1xf32>,
    %c0_i32_37 = arith.constant 0 : i32
    %83 = arith.cmpi eq, %arg1, %c0_i32_37 : i32
    %84 = arith.extui %83 : i1 to i32
    %c0_i32_38 = arith.constant 0 : i32
    %85 = arith.cmpi ne, %84, %c0_i32_38 : i32
    scf.if %85 {
      %c0_39 = arith.constant 0 : index
      %c0_40 = arith.constant 0 : index
      %86 = vector.load %arg8[%c0_39, %c0_40] : memref<16x1xf32, #tpu.memory_space<vmem>>, vector<16x1xf32>
      %87 = vector.shape_cast %86 : vector<16x1xf32> to vector<1x16x1xf32>
      %cst_41 = arith.constant dense<0.000000e+00> : vector<1xf32>
      %88 = vector.multi_reduction <add>, %87, %cst_41 [1, 2] : vector<1x16x1xf32> to vector<1xf32>
      %89 = vector.shape_cast %88 : vector<1xf32> to vector<1x1x1xf32>
      %90 = vector.extract %89[0, 0, 0] : f32 from vector<1x1x1xf32>
      %c0_42 = arith.constant 0 : index
      %c0_43 = arith.constant 0 : index
      %91 = memref.load %arg7[%c0_42, %c0_43] : memref<1x1xf32, #tpu.memory_space<smem>>
      memref.store %90, %arg7[%c0_42, %c0_43] : memref<1x1xf32, #tpu.memory_space<smem>>
    } else {
    }
    return
  }
  func.func @transform_0(%arg0: i32, %arg1: i32) -> (i32, i32) {
    %c0_i32 = arith.constant 0 : i32
    %c0_i32_0 = arith.constant 0 : i32
    return %arg0, %c0_i32 : i32, i32
  }
  func.func @transform_1(%arg0: i32, %arg1: i32) -> (i32, i32) {
    %c0_i32 = arith.constant 0 : i32
    %c0_i32_0 = arith.constant 0 : i32
    return %c0_i32, %arg1 : i32, i32
  }
  func.func @transform_2(%arg0: i32, %arg1: i32) -> (i32, i32) {
    %c0_i32 = arith.constant 0 : i32
    %c0_i32_0 = arith.constant 0 : i32
    return %arg0, %c0_i32 : i32, i32
  }
  func.func @transform_3(%arg0: i32, %arg1: i32) -> (i32, i32) {
    %c0_i32 = arith.constant 0 : i32
    %c0_i32_0 = arith.constant 0 : i32
    return %c0_i32, %arg1 : i32, i32
  }
  func.func @transform_4(%arg0: i32, %arg1: i32) -> (i32, i32) {
    %c0_i32 = arith.constant 0 : i32
    %c0_i32_0 = arith.constant 0 : i32
    %c0_i32_1 = arith.constant 0 : i32
    return %c0_i32, %c0_i32_0 : i32, i32
  }
  func.func @transform_5(%arg0: i32, %arg1: i32) -> (i32, i32) {
    %c0_i32 = arith.constant 0 : i32
    %c0_i32_0 = arith.constant 0 : i32
    return %arg0, %c0_i32 : i32, i32
  }
}

</mosaic_0001>

<llo_original>
// kernel: tpu_custom_call.1
$region0: #{tpu_custom_call.1}
  #allocation0 [shape = 'u32[]', space=smem, size = 0x4, offset = 0x4, fixed_abs, tag = 'smem constant byte address 0x4 - core index']
  #allocation1 [shape = 'u32[144,128]{1,0:T(1,128)}', space=vmem, size = 0x12000, scoped, tag = 'internal scratch']
  #allocation2 [shape = 'f32[16,1]{1,0:T(8,128)}', space=vmem, size = 0x2000, scoped, tag = 'scratch operand']
  #allocation3 [shape = 'f32[1,1]{1,0:T(1,128)S(6)}', space=smem, size = 0x200, scoped, tag = 'scoped memory for tpu_custom_call.1']
  %s0 = inlined_call_operand.vmem [shape: bf16[16,32], index: 0, kind: input, shape index: {}]
  %s1 = inlined_call_operand.vmem [shape: bf16[32,128], index: 1, kind: input, shape index: {}]
  %s2 = inlined_call_operand.vmem [shape: s32[16,1], index: 2, kind: input, shape index: {}]
  %s3 = inlined_call_operand.vmem [shape: s32[1,128], index: 3, kind: input, shape index: {}]
  %s4 = inlined_call_operand.<no memory space> [shape: f32[1,1], index: 4, kind: input, shape index: {}]
  %s5 = inlined_call_operand.hbm [shape: f32[1,1], index: 5, kind: output, shape index: {}]
  %s6 = sld [smem:[#allocation0]]
  $region38: #{tpu_custom_call.1} parent=0
    _
  %s8 = ssub.s32 1, %s6
  %s9 = scalar_select 0, %s8, %s6
  %10 = sst [smem:[#allocation3]] %s4
  $region1: #{tpu_custom_call.1} parent=0
    #allocation4 [shape = 'u8[512]{0}', space=smem, size = 0x200, scoped, tag = 'output window, operand 0, single buffered']
    #allocation5 [shape = 's32[1]{0}', space=sflag, size = 0x4, scoped, tag = 'scoped memory for tpu_custom_call.1']
    %11 = vsyncpa [#allocation5], 0
    // Predicated region
    $region2: #{tpu_custom_call.1} parent=1 // pred_check
      _
    $region3: #{tpu_custom_call.1} parent=1 // pred_check_branch
      %13 = sbr.rel (0) target = $region5
    $region4: #{tpu_custom_call.1} parent=1 // pred_region
      _
    $region5: #{tpu_custom_call.1} parent=1 // pred_fallthru
      _
    // Predicated region
    $region6: #{tpu_custom_call.1} parent=1 // pred_check
      _
    $region7: #{tpu_custom_call.1} parent=1 // pred_check_branch
      %15 = sbr.rel (0) target = $region9
    $region8: #{tpu_custom_call.1} parent=1 // pred_region
      _
    $region9: #{tpu_custom_call.1} parent=1 // pred_fallthru
      _
    // Predicated region
    $region10: #{tpu_custom_call.1} parent=1 // pred_check
      _
    $region11: #{tpu_custom_call.1} parent=1 // pred_check_branch
      %17 = sbr.rel (0) target = $region13
    $region12: #{tpu_custom_call.1} parent=1 // pred_region
      _
    $region13: #{tpu_custom_call.1} parent=1 // pred_fallthru
      _
    // Predicated region
    $region14: #{tpu_custom_call.1} parent=1 // pred_check
      _
    $region15: #{tpu_custom_call.1} parent=1 // pred_check_branch
      %19 = sbr.rel (0) target = $region17
    $region16: #{tpu_custom_call.1} parent=1 // pred_region
      _
    $region17: #{tpu_custom_call.1} parent=1 // pred_fallthru
      _
    // Predicated region
    $region18: #{tpu_custom_call.1} parent=1 // pred_check
      _
    $region19: #{tpu_custom_call.1} parent=1 // pred_check_branch
      %21 = sbr.rel (0) target = $region21
    $region20: #{tpu_custom_call.1} parent=1 // pred_region
      _
    $region21: #{tpu_custom_call.1} parent=1 // pred_fallthru
      _
    %p23 = scmp.eq.s32.totalorder 0, 0
    // Predicated region
    $region22: #{tpu_custom_call.1} parent=1 // pred_check
      %p24 = pneg %p23
    $region23: #{tpu_custom_call.1} parent=1 // pred_check_branch
      %26 = sbr.rel (%p24) target = $region25
    $region24: #{tpu_custom_call.1} parent=1 // pred_region
      %vm27 = vcmask 7168
      %28 = vst.msk [vmem:[#allocation2] sm:$0xff] %vm27, 0.0
      %29 = vst.msk [vmem:[#allocation2 + $0x8] sm:$0xff] %vm27, 0.0
    $region25: #{tpu_custom_call.1} parent=1 // pred_fallthru
      _
    %v30 = vld [vmem:[%s0] sm:$0xf]
    %v31 = vld [vmem:[%s0 + $0x4] sm:$0xf]
    %v32 = vld [vmem:[%s1] sm:$0xf]
    %v33 = vld [vmem:[%s1 + $0x4] sm:$0xf]
    %v34 = vld [vmem:[%s1 + $0x8] sm:$0xf]
    %v35 = vld [vmem:[%s1 + $0xc] sm:$0xf]
    %v38 = vunpack.c.l.b16 %v30
    %v39 = vunpack.c.l.b16 %v31
    %v40 = vpack.c.b16 %v39, %v38
    %v45 = vunpack.c.l.b16 %v32
    %v46 = vunpack.c.l.b16 %v33
    %v47 = vunpack.c.l.b16 %v34
    %v48 = vunpack.c.l.b16 %v35
    %v49 = vpack.c.b16 %v46, %v45
    %v50 = vpack.c.b16 %v48, %v47
    %vm53 = vcmask 261120
    %v55 = vsel %vm53, %v40, 0
    %57 = vmatprep.subr.bf16.mxu0 0
    %58 = vmatpush1.bf16.msra.mxu0 %v49
    %59 = vmatprep.subr.bf16.mxu0 0
    %60 = vmatpush1.bf16.msra.mxu0 %v50
    %61 = vmatprep.subr.bf16.mxu0 0
    %62 = vmatpush1.bf16.msra.mxu0 0
    %63 = vmatprep.subr.bf16.mxu0 0
    %64 = vmatpush1.bf16.msra.mxu0 0
    %65 = vmatprep.subr.bf16.mxu0 0
    %66 = vmatpush1.bf16.msra.mxu0 0
    %67 = vmatprep.subr.bf16.mxu0 0
    %68 = vmatpush1.bf16.msra.mxu0 0
    %69 = vmatprep.subr.bf16.mxu0 0
    %70 = vmatpush1.bf16.msra.mxu0 0
    %71 = vmatprep.subr.bf16.mxu0 0
    %72 = vmatpush1.bf16.msra.mxu0 0
    %73 = vmatprep.subr.bf16.mxu0 0
    %74 = vmatpush1.bf16.msra.mxu0 0
    %75 = vmatprep.subr.bf16.mxu0 0
    %76 = vmatpush1.bf16.msra.mxu0 0
    %77 = vmatprep.subr.bf16.mxu0 0
    %78 = vmatpush1.bf16.msra.mxu0 0
    %79 = vmatprep.subr.bf16.mxu0 0
    %80 = vmatpush1.bf16.msra.mxu0 0
    %81 = vmatprep.subr.bf16.mxu0 0
    %82 = vmatpush1.bf16.msra.mxu0 0
    %83 = vmatprep.subr.bf16.mxu0 0
    %84 = vmatpush1.bf16.msra.mxu0 0
    %85 = vmatprep.subr.bf16.mxu0 0
    %86 = vmatpush1.bf16.msra.mxu0 0
    %87 = vmatprep.subr.bf16.mxu0 0
    %88 = vmatpush1.bf16.msra.mxu0 0
    %89 = vmatprep.mubr.bf16.mxu0 0
    %90 = vmatmul.mubr.bf16.gmra.mrb[0].mxu0 %v55
    %v91 = vpop.f32.mrb[0].mxu0
    %v92 = vadd.f32 0.0, %v91
    %v93 = vpop.f32.mrb[0].mxu0
    %v94 = vpop.f32.mrb[0].mxu0
    %v95 = vadd.f32 0.0, %v94
    %v96 = vpop.f32.mrb[0].mxu0
    %97 = vdwg.mxu0
    %s98 = sld [smem:[#allocation3]]
    %v99 = vld [vmem:[%s2] sm:$0xff]
    %v100 = vld [vmem:[%s2 + $0x8] sm:$0xff]
    %v101 = vld [vmem:[%s3] sm:$0x1]
    %vm102 = vcmp.ge.s32.totalorder %v101, 0
    %v103 = vsel %vm102, 0.0, -128.0
    %v104 = vmul.f32 %v92, 64.0
    %v105 = vmul.f32 %v95, 64.0
    %v106 = vstv %s98
    %v107 = vsub.f32 %v104, %v106
    %v108 = vsub.f32 %v105, %v106
    %v110 = vlaneseq
    %v111 = vshrl.u32 %v110, 7
    %v112 = vsub.s32 0, %v111
    %v113 = vrot.slane %v103, %v112
    %v115 = vadd.f32 %v107, %v113
    %v116 = vadd.f32 %v108, %v113
    %v117 = vmax.f32 %v115, -64.0
    %v118 = vmax.f32 %v116, -64.0
    %v119 = vmin.f32 %v117, 64.0
    %v120 = vmin.f32 %v118, 64.0
    %v121 = vmul.f32 %v119, 1.442695
    %v122 = vpow.pop %v121
    %v123 = vmul.f32 %v120, 1.442695
    %v124 = vpow.pop %v123
    %v125 = vadd.f32 %v122, 1.0
    %v126 = vadd.f32 %v124, 1.0
    %v127 = vlog2.pop %v125
    %v128 = vmul.f32 %v127, 0.6931472
    %v129 = vlog2.pop %v126
    %v130 = vmul.f32 %v129, 0.6931472
    %131 = vadd.xlane.f32.xlu0 %v128
    %v132 = vpop.xlane.xlu0 %131
    %133 = vadd.xlane.f32.xlu0 %v130
    %v134 = vpop.xlane.xlu0 %133
    %135 = vset.pattern.permute.xlu0 0
    %136 = vperm.xlu0 %135, %v99
    %v137 = vpop.permute.xlu0 %136
    %138 = vset.pattern.permute.xlu0 0
    %139 = vperm.xlu0 %138, %v100
    %v140 = vpop.permute.xlu0 %139
    %v141 = vlaneseq
    %v142 = vshrl.u32 %v141, 7
    %v143 = vsub.s32 0, %v142
    %v144 = vrot.slane %v101, %v143
    %vm145 = vcmp.eq.s32.totalorder %v137, %v144
    %vm146 = vcmp.eq.s32.totalorder %v140, %v144
    %v147 = vsel %vm145, 1, 0
    %v148 = vsel %vm146, 1, 0
    %v149 = vcvt.s32.f32 %v147
    %v150 = vcvt.s32.f32 %v148
    %v151 = vmul.f32 %v149, %v92
    %v152 = vmul.f32 %v150, %v95
    %153 = vadd.xlane.f32.xlu0 %v151
    %v154 = vpop.xlane.xlu0 %153
    %155 = vadd.xlane.f32.xlu0 %v152
    %v156 = vpop.xlane.xlu0 %155
    %157 = vadd.xlane.f32.xlu0 %v149
    %v158 = vpop.xlane.xlu0 %157
    %159 = vadd.xlane.f32.xlu0 %v150
    %v160 = vpop.xlane.xlu0 %159
    %v161 = vsub.f32 %v154, 0.4
    %v162 = vsub.f32 %v156, 0.4
    %v163 = vmul.f32 %v161, 64.0
    %v164 = vmul.f32 %v162, 64.0
    %v165 = vsub.f32 %v163, %v106
    %v166 = vsub.f32 %v164, %v106
    %v167 = vmax.f32 %v165, -64.0
    %v168 = vmax.f32 %v166, -64.0
    %v169 = vmin.f32 %v167, 64.0
    %v170 = vmin.f32 %v168, 64.0
    %v171 = vsub.f32 0.0, %v169
    %v172 = vsub.f32 0.0, %v170
    %v173 = vmul.f32 %v171, 1.442695
    %v174 = vpow.pop %v173
    %v175 = vmul.f32 %v172, 1.442695
    %v176 = vpow.pop %v175
    %v177 = vadd.f32 %v174, 1.0
    %v178 = vadd.f32 %v176, 1.0
    %v179 = vlog2.pop %v177
    %v180 = vmul.f32 %v179, 0.6931472
    %v181 = vlog2.pop %v178
    %v182 = vmul.f32 %v181, 0.6931472
    %v183 = vmul.f32 %v154, 64.0
    %v184 = vmul.f32 %v156, 64.0
    %v185 = vsub.f32 %v183, %v106
    %v186 = vsub.f32 %v184, %v106
    %v187 = vmax.f32 %v185, -64.0
    %v188 = vmax.f32 %v186, -64.0
    %v189 = vmin.f32 %v187, 64.0
    %v190 = vmin.f32 %v188, 64.0
    %v191 = vmul.f32 %v189, 1.442695
    %v192 = vpow.pop %v191
    %v193 = vmul.f32 %v190, 1.442695
    %v194 = vpow.pop %v193
    %v195 = vadd.f32 %v192, 1.0
    %v196 = vadd.f32 %v194, 1.0
    %v197 = vlog2.pop %v195
    %v198 = vmul.f32 %v197, 0.6931472
    %v199 = vlog2.pop %v196
    %v200 = vmul.f32 %v199, 0.6931472
    %v201 = vsub.f32 %v180, %v198
    %v202 = vsub.f32 %v182, %v200
    %v203 = vmul.f32 %v158, %v201
    %v204 = vmul.f32 %v160, %v202
    %vm205 = vcmp.ge.s32.totalorder %v99, 0
    %vm206 = vcmp.ge.s32.totalorder %v100, 0
    %v207 = vsel %vm205, 1, 0
    %v208 = vsel %vm206, 1, 0
    %v209 = vcvt.s32.f32 %v207
    %v210 = vcvt.s32.f32 %v208
    %v211 = vld [vmem:[#allocation2] sm:$0xff]
    %v212 = vld [vmem:[#allocation2 + $0x8] sm:$0xff]
    %v213 = vadd.f32 %v132, %v203
    %v214 = vadd.f32 %v134, %v204
    %v215 = vmul.f32 %v213, %v209
    %v216 = vmul.f32 %v214, %v210
    %v217 = vadd.f32 %v211, %v215
    %v218 = vadd.f32 %v212, %v216
    %vm219 = vcmask 7168
    %220 = vst.msk [vmem:[#allocation2] sm:$0xff] %vm219, %v217
    %221 = vst.msk [vmem:[#allocation2 + $0x8] sm:$0xff] %vm219, %v218
    // Predicated region
    $region26: #{tpu_custom_call.1} parent=1 // pred_check
      %p222 = pneg %p23
    $region27: #{tpu_custom_call.1} parent=1 // pred_check_branch
      %224 = sbr.rel (%p222) target = $region29
    $region28: #{tpu_custom_call.1} parent=1 // pred_region
      %v225 = vld [vmem:[#allocation2] sm:$0xff]
      %v226 = vld [vmem:[#allocation2 + $0x8] sm:$0xff]
      %v227 = vsel %vm219, %v225, 0.0
      %v228 = vsel %vm219, %v226, 0.0
      %v229 = vadd.f32 %v227, %v228
      %230 = vadd.xlane.f32.xlu0 %v229
      %v231 = vpop.xlane.xlu0 %230
      %v232 = vrot.slane %v231, 4
      %v233 = vadd.f32 %v231, %v232
      %v234 = vrot.slane %v233, 2
      %v235 = vadd.f32 %v233, %v234
      %v236 = vrot.slane %v235, 1
      %v237 = vadd.f32 %v235, %v236
      %s238 = vtos %v237
      %s239 = scalar_lea.smem [#allocation4], 0
      %240 = sst [smem:[%s239]] %s238
    $region29: #{tpu_custom_call.1} parent=1 // pred_fallthru
      _
    // Predicated region
    $region30: #{tpu_custom_call.1} parent=1 // pred_check
      _
    $region31: #{tpu_custom_call.1} parent=1 // pred_check_branch
      %242 = sbr.rel (0) target = $region33
    $region32: #{tpu_custom_call.1} parent=1 // pred_region
      %s244 = ssub.s32 16, 16
      %245 = vsyncadd [#allocation5], %s244
      %248 = dma.smem_to_hbm [#allocation4], 16, %s5, [#allocation5]
    $region33: #{tpu_custom_call.1} parent=1 // pred_fallthru
      _
    // Predicated region
    $region34: #{tpu_custom_call.1} parent=1 // pred_check
      _
    $region35: #{tpu_custom_call.1} parent=1 // pred_check_branch
      %250 = sbr.rel (0) target = $region37
    $region36: #{tpu_custom_call.1} parent=1 // pred_region
      %251 = dma.done [#allocation5], 16
    $region37: #{tpu_custom_call.1} parent=1 // pred_fallthru
      _
    %252 = sfence
    %253 = vsyncpa [#allocation5], 1

</llo_original>
